<compile_context>
chip_gen: v7x
topology: tpu7x:2x2x1
jax: 0.10.0
libtpu: 0.0.40
codegen_flags: <defaults>
</compile_context>

<pallas_src>
import functools

import jax
import jax.numpy as jnp
from jax import lax
from jax.experimental import pallas as pl
from jax.experimental.pallas import tpu as pltpu


def _linear_kernel(x_ref, w_ref, b_ref, o_ref, *, compute_dtype):
    # x_ref: [TM, hidden]        (input dtype, cast on-chip)
    # w_ref: [N_tile, hidden]    (PyTorch nn.Linear weight layout, VMEM-resident)
    # b_ref: [1, N_tile]
    # o_ref: [TM, N_tile]
    x = x_ref[...].astype(compute_dtype)
    w = w_ref[...].astype(compute_dtype)
    acc = lax.dot_general(
        x, w,
        dimension_numbers=(((1,), (1,)), ((), ())),   # contract hidden of both => x @ W^T
        preferred_element_type=jnp.float32,
    )
    o_ref[...] = (acc + b_ref[...].astype(jnp.float32)).astype(o_ref.dtype)


def _round_up(v, m):
    return ((v + m - 1) // m) * m


def _vmem_budget_bytes():
    # Generation-aware budget with headroom (v5e/v6e: 128 MiB physical, v7x: 64 MiB per TC).
    try:
        cap = int(getattr(pltpu.get_tpu_info(), "vmem_capacity_bytes"))
    except Exception:
        cap = 64 * 1024 * 1024
    return int(cap * 0.7), cap


def single_linear_classifier(x, weight, bias, *, compute_dtype=jnp.bfloat16):
    """y = x @ weight.T + bias  (forward of SingleLinearClassifier).

    compute_dtype controls MXU input precision only (accumulation is always f32).
    Pass jnp.float32 if exact f32 logits are required.
    """
    orig_shape = x.shape
    hidden = orig_shape[-1]
    num_label = weight.shape[0]
    out_dtype = x.dtype

    x2d = x.reshape(-1, hidden)
    m = x2d.shape[0]
    b2d = bias.reshape(1, num_label)

    x_bytes = jnp.dtype(x.dtype).itemsize
    w_bytes = jnp.dtype(weight.dtype).itemsize
    out_bytes = jnp.dtype(out_dtype).itemsize

    budget, vmem_cap = _vmem_budget_bytes()

    # --- N tiling: keep the whole weight VMEM-resident (constant index_map -> DMA'd once,
    # though the pipeline still allocates 2 buffers) when it fits; otherwise tile num_label
    # in lane-dense multiples of 128 so the kernel stays functional on v7x.
    w_full_buf = 2 * num_label * hidden * w_bytes          # double-buffered footprint
    if num_label <= 128 or w_full_buf <= budget // 2:
        n_tile = num_label
    else:
        n_tile = 128
        while (n_tile * 2 <= _round_up(num_label, 128)
               and 2 * (2 * n_tile) * hidden * w_bytes <= budget // 2):
            n_tile *= 2
    n_grid = pl.cdiv(num_label, n_tile)

    # --- M tiling: biggest tile whose double-buffered x + output fits what the weight leaves.
    resident = 2 * n_tile * hidden * w_bytes + 2 * n_tile * 4   # weight + bias buffers
    tm = 2048
    while tm > 256 and 2 * tm * (hidden * x_bytes + n_tile * out_bytes) > (budget - resident):
        tm //= 2
    if m < tm:
        tm = max(8, _round_up(m, 8))
    m_grid = pl.cdiv(m, tm)
    # TODO(synk): add K tiling (f32 acc scratch + pl.when init/finalize on an "arbitrary"
    # trailing grid axis) for hidden sizes so large that even tm=256 overflows the budget.

    cost = pl.CostEstimate(
        flops=2 * m * hidden * num_label,
        transcendentals=0,
        bytes_accessed=(m * hidden * x_bytes
                        + num_label * hidden * w_bytes
                        + num_label * bias.dtype.itemsize
                        + m * num_label * out_bytes),
    )

    kernel = functools.partial(_linear_kernel, compute_dtype=compute_dtype)

    out = pl.pallas_call(
        kernel,
        out_shape=jax.ShapeDtypeStruct((m, num_label), out_dtype),
        grid_spec=pltpu.PrefetchScalarGridSpec(
            num_scalar_prefetch=0,
            grid=(n_grid, m_grid),                 # N outermost: weight tile stays put while M streams
            in_specs=[
                pl.BlockSpec((tm, hidden), lambda n, i: (i, 0)),      # stream x tiles (unpadded K)
                pl.BlockSpec((n_tile, hidden), lambda n, i: (n, 0)),  # weight, VMEM-resident per N tile
                pl.BlockSpec((1, n_tile), lambda n, i: (0, n)),       # bias
            ],
            out_specs=pl.BlockSpec((tm, n_tile), lambda n, i: (i, n)),  # true-width output, no N pad
        ),
        compiler_params=pltpu.CompilerParams(
            dimension_semantics=("parallel", "parallel"),   # M shards across megacore TCs
            vmem_limit_bytes=min(budget + budget // 4, int(vmem_cap * 0.9)),
        ),
        cost_estimate=cost,
    )(x2d, weight, b2d)

    return out.reshape(*orig_shape[:-1], num_label)


if __name__ == "__main__":
    batch, seq, hidden, num_label = 2, 8, 32, 4

    key = jax.random.PRNGKey(0)
    kx, kw, kb = jax.random.split(key, 3)

    # Deterministic synthetic parameters matching nn.Linear(hidden, num_label) shapes.
    x = jax.random.normal(kx, (batch, seq, hidden), dtype=jnp.float32)
    weight = jax.random.normal(kw, (num_label, hidden), dtype=jnp.float32) * 0.1
    bias = jax.random.normal(kb, (num_label,), dtype=jnp.float32) * 0.1

    out = single_linear_classifier(x, weight, bias)
    jax.block_until_ready(out)

    # Reference (plain JAX, f32): y = x @ W^T + b.
    ref = jnp.einsum("bsh,nh->bsn", x, weight) + bias
    assert out.shape == (batch, seq, num_label)
    # Loose tolerance: MXU inputs are bf16 by default (f32 accumulate).
    assert jnp.allclose(out, ref, atol=5e-2, rtol=5e-2)

    print("KERNEL_OK")
</pallas_src>

<mosaic_0001>
module attributes {stable_mosaic.version = 11 : i64} {
  func.func @_linear_kernel(%arg0: i32, %arg1: i32, %arg2: memref<16x32xf32, #tpu.memory_space<vmem>>, %arg3: memref<4x32xf32, #tpu.memory_space<vmem>>, %arg4: memref<1x4xf32, #tpu.memory_space<vmem>>, %arg5: memref<16x4xf32, #tpu.memory_space<vmem>>) attributes {dimension_semantics = [#tpu.dimension_semantics<parallel>, #tpu.dimension_semantics<parallel>], iteration_bounds = array<i64: 1, 1>, scalar_prefetch = 0 : i64, scratch_operands = 0 : i64, tpu.core_type = #tpu.core_type<tc>, window_params = [{transform_indices = @transform_0, window_bounds = array<i64: 16, 32>}, {transform_indices = @transform_1, window_bounds = array<i64: 4, 32>}, {transform_indices = @transform_2, window_bounds = array<i64: 1, 4>}, {transform_indices = @transform_3, window_bounds = array<i64: 16, 4>}]} {
    %c0 = arith.constant 0 : index
    %c0_0 = arith.constant 0 : index
    %0 = vector.load %arg2[%c0, %c0_0] : memref<16x32xf32, #tpu.memory_space<vmem>>, vector<16x32xf32>
    %1 = arith.truncf %0 : vector<16x32xf32> to vector<16x32xbf16>
    %c0_1 = arith.constant 0 : index
    %c0_2 = arith.constant 0 : index
    %2 = vector.load %arg3[%c0_1, %c0_2] : memref<4x32xf32, #tpu.memory_space<vmem>>, vector<4x32xf32>
    %3 = arith.truncf %2 : vector<4x32xf32> to vector<4x32xbf16>
    %cst = arith.constant dense<0.000000e+00> : vector<16x4xf32>
    %4 = tpu.matmul %1, %3, %cst {dimension_numbers = #tpu.dot_dimension_numbers<[1], [1], [0], [0], [0, 0, 1, 0], [], []>} : vector<16x32xbf16>, vector<4x32xbf16>, vector<16x4xf32> -> vector<16x4xf32>
    %c0_3 = arith.constant 0 : index
    %c0_4 = arith.constant 0 : index
    %5 = vector.load %arg4[%c0_3, %c0_4] : memref<1x4xf32, #tpu.memory_space<vmem>>, vector<1x4xf32>
    %6 = vector.broadcast %5 : vector<1x4xf32> to vector<16x4xf32>
    %7 = arith.addf %4, %6 : vector<16x4xf32>
    %c0_5 = arith.constant 0 : index
    %c0_6 = arith.constant 0 : index
    %8 = vector.load %arg5[%c0_5, %c0_6] : memref<16x4xf32, #tpu.memory_space<vmem>>, vector<16x4xf32>
    tpu.vector_store %arg5[%c0_5, %c0_6], %7 {strides = array<i32>} : memref<16x4xf32, #tpu.memory_space<vmem>>, vector<16x4xf32>,
    return
  }
  func.func @transform_0(%arg0: i32, %arg1: i32) -> (i32, i32) {
    %c0_i32 = arith.constant 0 : i32
    %c0_i32_0 = arith.constant 0 : i32
    return %arg1, %c0_i32 : i32, i32
  }
  func.func @transform_1(%arg0: i32, %arg1: i32) -> (i32, i32) {
    %c0_i32 = arith.constant 0 : i32
    %c0_i32_0 = arith.constant 0 : i32
    return %arg0, %c0_i32 : i32, i32
  }
  func.func @transform_2(%arg0: i32, %arg1: i32) -> (i32, i32) {
    %c0_i32 = arith.constant 0 : i32
    %c0_i32_0 = arith.constant 0 : i32
    return %c0_i32, %arg0 : i32, i32
  }
  func.func @transform_3(%arg0: i32, %arg1: i32) -> (i32, i32) {
    %c0_i32 = arith.constant 0 : i32
    return %arg1, %arg0 : i32, i32
  }
}

</mosaic_0001>

<llo_original>
// kernel: tpu_custom_call.1
$region0: #{tpu_custom_call.1}
  #allocation0 [shape = 'u32[]', space=smem, size = 0x4, offset = 0x4, fixed_abs, tag = 'smem constant byte address 0x4 - core index']
  #allocation1 [shape = 'u32[144,128]{1,0:T(1,128)}', space=vmem, size = 0x12000, scoped, tag = 'internal scratch']
  %s0 = inlined_call_operand.hbm [shape: f32[16,32], index: 0, kind: input, shape index: {}]
  %s1 = inlined_call_operand.hbm [shape: f32[4,32], index: 1, kind: input, shape index: {}]
  %s2 = inlined_call_operand.vmem [shape: f32[1,4], index: 2, kind: input, shape index: {}]
  %s3 = inlined_call_operand.vmem [shape: f32[16,4], index: 3, kind: output, shape index: {}]
  %s4 = sld [smem:[#allocation0]]
  $region30: #{tpu_custom_call.1} parent=0
    _
  %s6 = ssub.s32 1, %s4
  %s7 = scalar_select 0, %s6, %s4
  $region1: #{tpu_custom_call.1} parent=0
    #allocation2 [shape = 'u8[8192]{0}', space=vmem, size = 0x2000, scoped, tag = 'input window, operand 0, single buffered']
    #allocation3 [shape = 's32[1]{0}', space=sflag, size = 0x4, scoped, tag = 'scoped memory for tpu_custom_call.1']
    #allocation4 [shape = 'u8[2048]{0}', space=vmem, size = 0x800, scoped, tag = 'input window, operand 1, single buffered']
    #allocation5 [shape = 's32[1]{0}', space=sflag, size = 0x4, scoped, tag = 'scoped memory for tpu_custom_call.1']
    %8 = vsyncpa [#allocation3], 0
    %9 = vsyncpa [#allocation5], 0
    // Predicated region
    $region2: #{tpu_custom_call.1} parent=1 // pred_check
      _
    $region3: #{tpu_custom_call.1} parent=1 // pred_check_branch
      %11 = sbr.rel (0) target = $region5
    $region4: #{tpu_custom_call.1} parent=1 // pred_region
      %s13 = ssub.s32 256, 256
      %14 = vsyncadd [#allocation3], %s13
      %s15 = sshll.u32 [#allocation2], 4
      %s16 = int_to_ptr.vmem [resolvable:$true] %s15
      %21 = dma.hbm_to_vmem [thread:$0]  %s0, 256, %s16, [#allocation3], 128, 128, 8
    $region5: #{tpu_custom_call.1} parent=1 // pred_fallthru
      _
    // Predicated region
    $region6: #{tpu_custom_call.1} parent=1 // pred_check
      _
    $region7: #{tpu_custom_call.1} parent=1 // pred_check_branch
      %23 = sbr.rel (0) target = $region9
    $region8: #{tpu_custom_call.1} parent=1 // pred_region
      %s25 = ssub.s32 64, 64
      %26 = vsyncadd [#allocation5], %s25
      %s28 = sshll.u32 [#allocation4], 4
      %s29 = int_to_ptr.vmem [resolvable:$true] %s28
      %31 = dma.hbm_to_vmem [thread:$0]  %s1, 64, %s29, [#allocation5]
    $region9: #{tpu_custom_call.1} parent=1 // pred_fallthru
      _
    // Predicated region
    $region10: #{tpu_custom_call.1} parent=1 // pred_check
      _
    $region11: #{tpu_custom_call.1} parent=1 // pred_check_branch
      %33 = sbr.rel (0) target = $region13
    $region12: #{tpu_custom_call.1} parent=1 // pred_region
      _
    $region13: #{tpu_custom_call.1} parent=1 // pred_fallthru
      _
    // Predicated region
    $region14: #{tpu_custom_call.1} parent=1 // pred_check
      _
    $region15: #{tpu_custom_call.1} parent=1 // pred_check_branch
      %35 = sbr.rel (0) target = $region17
    $region16: #{tpu_custom_call.1} parent=1 // pred_region
      %36 = dma.done [#allocation3], 256
    $region17: #{tpu_custom_call.1} parent=1 // pred_fallthru
      _
    // Predicated region
    $region18: #{tpu_custom_call.1} parent=1 // pred_check
      _
    $region19: #{tpu_custom_call.1} parent=1 // pred_check_branch
      %38 = sbr.rel (0) target = $region21
    $region20: #{tpu_custom_call.1} parent=1 // pred_region
      %39 = dma.done [#allocation5], 64
    $region21: #{tpu_custom_call.1} parent=1 // pred_fallthru
      _
    %v41 = vld [vmem:[#allocation2] sm:$0xff]
    %v42 = vld [vmem:[#allocation2 + $0x8] sm:$0xff]
    %v43 = vpack.c.bf16 %v42, %v41
    %v44 = vld [vmem:[#allocation4] sm:$0xf]
    %v45 = vpack.c.bf16 %v44, %v44
    %v46 = vld [vmem:[%s2] sm:$0x1]
    %v48 = vlaneseq
    %v49 = vshrl.u32 %v48, 7
    %v50 = vsub.s32 0, %v49
    %v51 = vrot.slane %v46, %v50
    %vm53 = vcmask 261120
    %v55 = vsel %vm53, %v43, 0
    %v58 = vsel %vm53, %v45, 0
    %60 = vmatprep.subr.bf16.mxu0 0
    %61 = vmatpush1.bf16.xpose.msra.mxu0 %v58
    %62 = vmatprep.subr.bf16.mxu0 0
    %63 = vmatpush1.bf16.xpose.msra.mxu0 0
    %64 = vmatprep.subr.bf16.mxu0 0
    %65 = vmatpush1.bf16.xpose.msra.mxu0 0
    %66 = vmatprep.subr.bf16.mxu0 0
    %67 = vmatpush1.bf16.xpose.msra.mxu0 0
    %68 = vmatprep.subr.bf16.mxu0 0
    %69 = vmatpush1.bf16.xpose.msra.mxu0 0
    %70 = vmatprep.subr.bf16.mxu0 0
    %71 = vmatpush1.bf16.xpose.msra.mxu0 0
    %72 = vmatprep.subr.bf16.mxu0 0
    %73 = vmatpush1.bf16.xpose.msra.mxu0 0
    %74 = vmatprep.subr.bf16.mxu0 0
    %75 = vmatpush1.bf16.xpose.msra.mxu0 0
    %76 = vmatprep.subr.bf16.mxu0 0
    %77 = vmatpush1.bf16.xpose.msra.mxu0 0
    %78 = vmatprep.subr.bf16.mxu0 0
    %79 = vmatpush1.bf16.xpose.msra.mxu0 0
    %80 = vmatprep.subr.bf16.mxu0 0
    %81 = vmatpush1.bf16.xpose.msra.mxu0 0
    %82 = vmatprep.subr.bf16.mxu0 0
    %83 = vmatpush1.bf16.xpose.msra.mxu0 0
    %84 = vmatprep.subr.bf16.mxu0 0
    %85 = vmatpush1.bf16.xpose.msra.mxu0 0
    %86 = vmatprep.subr.bf16.mxu0 0
    %87 = vmatpush1.bf16.xpose.msra.mxu0 0
    %88 = vmatprep.subr.bf16.mxu0 0
    %89 = vmatpush1.bf16.xpose.msra.mxu0 0
    %90 = vmatprep.subr.bf16.mxu0 0
    %91 = vmatpush1.bf16.xpose.msra.mxu0 0
    %92 = vmatprep.mubr.bf16.mxu0 0
    %93 = vmatmul.mubr.bf16.gmra.mrb[0].mxu0 %v55
    %v94 = vpop.f32.mrb[0].mxu0
    %v95 = vadd.f32 %v51, %v94
    %v96 = vpop.f32.mrb[0].mxu0
    %v97 = vpop.f32.mrb[0].mxu0
    %v98 = vadd.f32 %v51, %v97
    %v99 = vpop.f32.mrb[0].mxu0
    %100 = vdwg.mxu0
    %vm101 = vcmask 31744
    %102 = vst.msk [vmem:[%s3] sm:$0xff] %vm101, %v95
    %103 = vst.msk [vmem:[%s3 + $0x8] sm:$0xff] %vm101, %v98
    // Predicated region
    $region22: #{tpu_custom_call.1} parent=1 // pred_check
      _
    $region23: #{tpu_custom_call.1} parent=1 // pred_check_branch
      %105 = sbr.rel (0) target = $region25
    $region24: #{tpu_custom_call.1} parent=1 // pred_region
      _
    $region25: #{tpu_custom_call.1} parent=1 // pred_fallthru
      _
    // Predicated region
    $region26: #{tpu_custom_call.1} parent=1 // pred_check
      _
    $region27: #{tpu_custom_call.1} parent=1 // pred_check_branch
      %107 = sbr.rel (0) target = $region29
    $region28: #{tpu_custom_call.1} parent=1 // pred_region
      _
    $region29: #{tpu_custom_call.1} parent=1 // pred_fallthru
      _
    %108 = vsyncpa [#allocation3], 1
    %109 = vsyncpa [#allocation5], 1

</llo_original>
